<compile_context>
chip_gen: v5e
topology: v5e:2x2
jax: 0.10.0
libtpu: 0.0.40
codegen_flags: <defaults>
</compile_context>

<pallas_src>
import jax
import jax.numpy as jnp
from jax import lax
from jax.experimental import pallas as pl
from jax.experimental.pallas import tpu as pltpu

NMOD = 3  # number of SingleBranchReversibleModule's merged by MergeCalls


def merge_calls_kernel(x_ref, w_ref, b_ref, o_ref):
    # x_ref: (C, TS)        tile: channels on sublanes, spatial on lanes
    # w_ref: (NMOD, C, C)   stacked 1x1-conv weights, (out_ch, in_ch) per module
    # b_ref: (NMOD, C, 1)   stacked biases (broadcast over lanes)
    # HBM-resident data may be bf16; all in-register compute is f32.
    x = x_ref[...].astype(jnp.float32)

    def conv_relu(i, y):
        w = w_ref[i].astype(jnp.float32)           # (C, C), static index
        b = b_ref[i].astype(jnp.float32)           # (C, 1), lane-broadcast
        f = jnp.dot(w, y, preferred_element_type=jnp.float32)
        return jnp.maximum(f + b, 0.0)             # wrapped module: conv1x1+ReLU

    # y_{-2} = 0, y_{-1} = x,  y_i = y_{i-2} + f_i(y_{i-1})
    y_im1 = conv_relu(0, x)                        # y_0 = 0 + f_0(x)
    y_im2 = x                                      # y_{-1}
    for i in range(1, NMOD):                       # static unroll over modules
        y_im2, y_im1 = y_im1, y_im2 + conv_relu(i, y_im1)

    o_ref[...] = y_im1.astype(o_ref.dtype)


def _pick_tile_s(s, target):
    # Largest divisor of s that is a multiple of 128 and <= target.
    # Falls back to the full extent (always a legal block size) otherwise.
    best = s
    t = 128
    while t <= min(s, target):
        if s % t == 0:
            best = t
        t += 128
    return best


def merge_calls_forward(x_nchw, weights, biases, *, target_tile_s=8192):
    """x_nchw: (N, C, H, W); weights: (NMOD, C_out, C_in); biases: (NMOD, C)."""
    N, C, H, W = x_nchw.shape
    S = H * W
    x = x_nchw.reshape(N, C, S)            # free reshape — no HBM transpose
    b = biases.reshape(NMOD, C, 1)
    tile_s = _pick_tile_s(S, target_tile_s)
    grid = (N, S // tile_s)

    def nbytes(a):
        return int(a.size) * a.dtype.itemsize

    cost = pl.CostEstimate(
        flops=2 * NMOD * N * S * C * C + 3 * NMOD * N * S * C,
        transcendentals=0,
        bytes_accessed=2 * nbytes(x) + nbytes(weights) + nbytes(b),
    )

    out = pl.pallas_call(
        merge_calls_kernel,
        out_shape=jax.ShapeDtypeStruct((N, C, S), x.dtype),
        grid_spec=pltpu.PrefetchScalarGridSpec(
            num_scalar_prefetch=0,
            grid=grid,
            in_specs=[
                # streaming input tile: (C, tile_s), lane-dense last dim
                pl.BlockSpec((None, C, tile_s), lambda n, s: (n, 0, s)),
                # weights / biases: constant index_map -> resident, no re-fetch
                pl.BlockSpec((NMOD, C, C), lambda n, s: (0, 0, 0)),
                pl.BlockSpec((NMOD, C, 1), lambda n, s: (0, 0, 0)),
            ],
            out_specs=pl.BlockSpec((None, C, tile_s), lambda n, s: (n, 0, s)),
        ),
        compiler_params=pltpu.CompilerParams(
            dimension_semantics=("parallel", "parallel")),
        cost_estimate=cost,
    )(x, weights, b)

    return out.reshape(N, C, H, W)


def merge_calls_reference(x_nchw, weights, biases):
    N, C, H, W = x_nchw.shape
    x = x_nchw.reshape(N, C, H * W).astype(jnp.float32)
    w = weights.astype(jnp.float32)
    b = biases.reshape(NMOD, C, 1).astype(jnp.float32)
    y_im2 = jnp.zeros_like(x)
    y_im1 = x
    for i in range(NMOD):
        f = jnp.maximum(
            jnp.einsum("oc,ncs->nos", w[i], y_im1,
                       precision=lax.Precision.HIGHEST) + b[i], 0.0)
        y_im2, y_im1 = y_im1, y_im2 + f
    return y_im1.reshape(N, C, H, W).astype(x_nchw.dtype)


# TODO(synk): the branch where a wrapped module returns a tensor-list (residual
# stream + collate_fn merge) has no clean single-kernel equivalent and is not
# exercised here; backward/memory-savings machinery is autograd-only and does
# not affect forward values.

if __name__ == "__main__":
    key = jax.random.PRNGKey(0)
    kx, kw, kb = jax.random.split(key, 3)

    Nb, C, H, W = 2, 32, 16, 16
    x = jax.random.normal(kx, (Nb, C, H, W), dtype=jnp.float32)
    weights = 0.1 * jax.random.normal(kw, (NMOD, C, C), dtype=jnp.float32)
    biases = 0.01 * jax.random.normal(kb, (NMOD, C), dtype=jnp.float32)

    # --- f32 I/O (exact forward semantics of the PyTorch module) ---
    out = merge_calls_forward(x, weights, biases)
    out = jax.block_until_ready(out)
    ref = merge_calls_reference(x, weights, biases)
    assert out.shape == (Nb, C, H, W)
    assert jnp.allclose(out, ref, rtol=1e-3, atol=1e-3), "f32 mismatch vs reference"

    # --- bf16 HBM storage (bandwidth optimization), f32 in-kernel compute ---
    x_bf = x.astype(jnp.bfloat16)
    w_bf = weights.astype(jnp.bfloat16)
    b_bf = biases.astype(jnp.bfloat16)
    out_bf = merge_calls_forward(x_bf, w_bf, b_bf)
    out_bf = jax.block_until_ready(out_bf)
    ref_bf = merge_calls_reference(x_bf, w_bf, b_bf)
    assert out_bf.dtype == jnp.bfloat16
    assert jnp.allclose(out_bf.astype(jnp.float32), ref_bf.astype(jnp.float32),
                        rtol=1e-2, atol=1e-2), "bf16 mismatch vs reference"

    print("KERNEL_OK")
</pallas_src>

<mosaic_0001>
module attributes {stable_mosaic.version = 11 : i64} {
  func.func @merge_calls_kernel(%arg0: i32, %arg1: i32, %arg2: memref<1x32x256xf32, #tpu.memory_space<vmem>>, %arg3: memref<3x32x32xf32, #tpu.memory_space<vmem>>, %arg4: memref<3x32x1xf32, #tpu.memory_space<vmem>>, %arg5: memref<1x32x256xf32, #tpu.memory_space<vmem>>) attributes {dimension_semantics = [#tpu.dimension_semantics<parallel>, #tpu.dimension_semantics<parallel>], iteration_bounds = array<i64: 2, 1>, scalar_prefetch = 0 : i64, scratch_operands = 0 : i64, tpu.core_type = #tpu.core_type<tc>, window_params = [{transform_indices = @transform_0, window_bounds = array<i64: 1, 32, 256>}, {pipeline_mode = #tpu.pipeline_mode<synchronous>, transform_indices = @transform_1, window_bounds = array<i64: 3, 32, 32>}, {pipeline_mode = #tpu.pipeline_mode<synchronous>, transform_indices = @transform_2, window_bounds = array<i64: 3, 32, 1>}, {transform_indices = @transform_3, window_bounds = array<i64: 1, 32, 256>}]} {
    %c0 = arith.constant 0 : index
    %c0_0 = arith.constant 0 : index
    %c0_1 = arith.constant 0 : index
    %0 = vector.load %arg2[%c0, %c0_0, %c0_1] : memref<1x32x256xf32, #tpu.memory_space<vmem>>, vector<1x32x256xf32>
    %1 = vector.shape_cast %0 : vector<1x32x256xf32> to vector<32x256xf32>
    %c0_2 = arith.constant 0 : index
    %c0_3 = arith.constant 0 : index
    %c0_4 = arith.constant 0 : index
    %2 = vector.load %arg3[%c0_2, %c0_3, %c0_4] : memref<3x32x32xf32, #tpu.memory_space<vmem>>, vector<1x32x32xf32>
    %3 = vector.shape_cast %2 : vector<1x32x32xf32> to vector<32x32xf32>
    %c0_5 = arith.constant 0 : index
    %c0_6 = arith.constant 0 : index
    %c0_7 = arith.constant 0 : index
    %4 = vector.load %arg4[%c0_5, %c0_6, %c0_7] : memref<3x32x1xf32, #tpu.memory_space<vmem>>, vector<1x32x1xf32>
    %5 = vector.shape_cast %4 : vector<1x32x1xf32> to vector<32x1xf32>
    %cst = arith.constant dense<0.000000e+00> : vector<32x256xf32>
    %6 = tpu.matmul %3, %1, %cst {dimension_numbers = #tpu.dot_dimension_numbers<[1], [0], [0], [1], [0, 0, 1, 1], [], []>} : vector<32x32xf32>, vector<32x256xf32>, vector<32x256xf32> -> vector<32x256xf32>
    %7 = vector.broadcast %5 : vector<32x1xf32> to vector<32x256xf32>
    %8 = arith.addf %6, %7 : vector<32x256xf32>
    %cst_8 = arith.constant 0.000000e+00 : f32
    %9 = vector.broadcast %cst_8 : f32 to vector<32x256xf32>
    %10 = arith.maximumf %8, %9 : vector<32x256xf32>
    %c1 = arith.constant 1 : index
    %c0_9 = arith.constant 0 : index
    %c0_10 = arith.constant 0 : index
    %11 = vector.load %arg3[%c1, %c0_9, %c0_10] : memref<3x32x32xf32, #tpu.memory_space<vmem>>, vector<1x32x32xf32>
    %12 = vector.shape_cast %11 : vector<1x32x32xf32> to vector<32x32xf32>
    %c1_11 = arith.constant 1 : index
    %c0_12 = arith.constant 0 : index
    %c0_13 = arith.constant 0 : index
    %13 = vector.load %arg4[%c1_11, %c0_12, %c0_13] : memref<3x32x1xf32, #tpu.memory_space<vmem>>, vector<1x32x1xf32>
    %14 = vector.shape_cast %13 : vector<1x32x1xf32> to vector<32x1xf32>
    %cst_14 = arith.constant dense<0.000000e+00> : vector<32x256xf32>
    %15 = tpu.matmul %12, %10, %cst_14 {dimension_numbers = #tpu.dot_dimension_numbers<[1], [0], [0], [1], [0, 0, 1, 1], [], []>} : vector<32x32xf32>, vector<32x256xf32>, vector<32x256xf32> -> vector<32x256xf32>
    %16 = vector.broadcast %14 : vector<32x1xf32> to vector<32x256xf32>
    %17 = arith.addf %15, %16 : vector<32x256xf32>
    %cst_15 = arith.constant 0.000000e+00 : f32
    %18 = vector.broadcast %cst_15 : f32 to vector<32x256xf32>
    %19 = arith.maximumf %17, %18 : vector<32x256xf32>
    %20 = arith.addf %1, %19 : vector<32x256xf32>
    %c2 = arith.constant 2 : index
    %c0_16 = arith.constant 0 : index
    %c0_17 = arith.constant 0 : index
    %21 = vector.load %arg3[%c2, %c0_16, %c0_17] : memref<3x32x32xf32, #tpu.memory_space<vmem>>, vector<1x32x32xf32>
    %22 = vector.shape_cast %21 : vector<1x32x32xf32> to vector<32x32xf32>
    %c2_18 = arith.constant 2 : index
    %c0_19 = arith.constant 0 : index
    %c0_20 = arith.constant 0 : index
    %23 = vector.load %arg4[%c2_18, %c0_19, %c0_20] : memref<3x32x1xf32, #tpu.memory_space<vmem>>, vector<1x32x1xf32>
    %24 = vector.shape_cast %23 : vector<1x32x1xf32> to vector<32x1xf32>
    %cst_21 = arith.constant dense<0.000000e+00> : vector<32x256xf32>
    %25 = tpu.matmul %22, %20, %cst_21 {dimension_numbers = #tpu.dot_dimension_numbers<[1], [0], [0], [1], [0, 0, 1, 1], [], []>} : vector<32x32xf32>, vector<32x256xf32>, vector<32x256xf32> -> vector<32x256xf32>
    %26 = vector.broadcast %24 : vector<32x1xf32> to vector<32x256xf32>
    %27 = arith.addf %25, %26 : vector<32x256xf32>
    %cst_22 = arith.constant 0.000000e+00 : f32
    %28 = vector.broadcast %cst_22 : f32 to vector<32x256xf32>
    %29 = arith.maximumf %27, %28 : vector<32x256xf32>
    %30 = arith.addf %10, %29 : vector<32x256xf32>
    %c0_23 = arith.constant 0 : index
    %c0_24 = arith.constant 0 : index
    %c0_25 = arith.constant 0 : index
    %31 = vector.load %arg5[%c0_23, %c0_24, %c0_25] : memref<1x32x256xf32, #tpu.memory_space<vmem>>, vector<1x32x256xf32>
    %32 = vector.shape_cast %31 : vector<1x32x256xf32> to vector<32x256xf32>
    %33 = vector.shape_cast %30 : vector<32x256xf32> to vector<1x32x256xf32>
    tpu.vector_store %arg5[%c0_23, %c0_24, %c0_25], %33 {strides = array<i32>} : memref<1x32x256xf32, #tpu.memory_space<vmem>>, vector<1x32x256xf32>,
    return
  }
  func.func @transform_0(%arg0: i32, %arg1: i32) -> (i32, i32, i32) {
    %c0_i32 = arith.constant 0 : i32
    %c0_i32_0 = arith.constant 0 : i32
    return %arg0, %c0_i32, %arg1 : i32, i32, i32
  }
  func.func @transform_1(%arg0: i32, %arg1: i32) -> (i32, i32, i32) {
    %c0_i32 = arith.constant 0 : i32
    %c0_i32_0 = arith.constant 0 : i32
    %c0_i32_1 = arith.constant 0 : i32
    %c0_i32_2 = arith.constant 0 : i32
    return %c0_i32, %c0_i32_0, %c0_i32_1 : i32, i32, i32
  }
  func.func @transform_2(%arg0: i32, %arg1: i32) -> (i32, i32, i32) {
    %c0_i32 = arith.constant 0 : i32
    %c0_i32_0 = arith.constant 0 : i32
    %c0_i32_1 = arith.constant 0 : i32
    %c0_i32_2 = arith.constant 0 : i32
    return %c0_i32, %c0_i32_0, %c0_i32_1 : i32, i32, i32
  }
  func.func @transform_3(%arg0: i32, %arg1: i32) -> (i32, i32, i32) {
    %c0_i32 = arith.constant 0 : i32
    %c0_i32_0 = arith.constant 0 : i32
    return %arg0, %c0_i32, %arg1 : i32, i32, i32
  }
}

</mosaic_0001>

<llo_original>
// kernel: tpu_custom_call.1
$region0: #{tpu_custom_call.1}
  #allocation0 [shape = 'u32[]', space=smem, size = 0x4, offset = 0x4, fixed_abs, tag = 'smem constant byte address 0x4 - core index']
  #allocation1 [shape = 'u32[72,128]{1,0:T(1,128)}', space=vmem, size = 0x9000, scoped, tag = 'internal scratch']
  %s0 = inlined_call_operand.hbm [shape: f32[2,32,256], index: 0, kind: input, shape index: {}]
  %s1 = inlined_call_operand.vmem [shape: f32[3,32,32], index: 1, kind: input, shape index: {}]
  %s2 = inlined_call_operand.vmem [shape: f32[3,32,1], index: 2, kind: input, shape index: {}]
  %s3 = inlined_call_operand.hbm [shape: f32[2,32,256], index: 3, kind: output, shape index: {}]
  %s4 = sld [smem:[#allocation0]]
  $region49: #{tpu_custom_call.1} parent=0
    _
  %s6 = ssub.s32 1, %s4
  %s7 = scalar_select 0, %s6, %s4
  $region1: #{tpu_custom_call.1} parent=0
    #allocation2 [shape = 'u8[65536]{0}', space=vmem, size = 0x10000, scoped, tag = 'input window, operand 0']
    #allocation3 [shape = 's32[2]{0}', space=sflag, size = 0x8, scoped, tag = 'scoped memory for tpu_custom_call.1']
    #allocation4 [shape = 's32[2]{0}', space=sflag, size = 0x8, scoped, tag = 'scoped memory for tpu_custom_call.1']
    #allocation5 [shape = 'u8[65536]{0}', space=vmem, size = 0x10000, scoped, tag = 'output window, operand 0']
    %8 = vsyncpa [#allocation3], 0
    %s9 = scalar_lea.sflag [#allocation3], 1
    %10 = vsyncpa %s9, 0
    %11 = vsyncpa [#allocation4], 0
    %s12 = scalar_lea.sflag [#allocation4], 1
    %13 = vsyncpa %s12, 0
    loop: start=0, step=1, limit=4
    $region2: #{tpu_custom_call.1} parent=1 // loop_pre_header
      _
    $region3: #{tpu_custom_call.1} parent=1 // loop_header
      %s15 = sphi 0, %s19
      %p16 = scmp.ge.s32.totalorder %s15, 4
      %s22 = sphi 0, %s34
      %s23 = sphi 0, %s30
      %s24 = sphi 0, %s22
      %s25 = sphi 0, %s23
      %s26 = sphi 0, %s24
      %s27 = sphi 0, %s25
      %s39 = sphi 0, %s41
      %s42 = sphi 0, %s39
      %s43 = sphi 0, %s42
      %s59 = sphi 0, %s43
      %s63 = sphi 0, %s63
      %s65 = sphi 0, %s63
      %s66 = sphi 0, %s65
      %s80 = sphi 0, %s66
      %s84 = sphi 0, %s84
      %s86 = sphi 0, %s84
      %s87 = sphi 0, %s86
      %s101 = sphi 0, %s87
      %s109 = sphi 0, %s111
      %s112 = sphi 0, %s109
      %s113 = sphi 0, %s112
      %s129 = sphi 0, %s113
    $region4: #{tpu_custom_call.1} parent=1 // loop_header_branch
      %18 = sbr.rel (%p16) target = $region8
    $region5: #{tpu_custom_call.1} parent=1 // loop_body
      %s20 = ssub.s32 %s15, 1
      %s21 = ssub.s32 %s15, 2
      %s28 = sadd.s32 1, %s23
      %p29 = scmp.ge.s32.totalorder %s28, 1
      %s30 = scalar_select %p29, 0, %s28
      %s31 = sadd.s32 1, %s22
      %s32 = scalar_select %p29, %s31, %s22
      %p33 = scmp.ge.s32.totalorder %s32, 2
      %s34 = scalar_select %p33, 0, %s32
      %s35 = ssub.s32 %s22, %s34
      %s36 = ssub.s32 %s23, %s30
      %s37 = sor.u32 %s35, %s36
      %p38 = scmp.eq.s32.totalorder %s37, 0
      %s40 = sadd.s32 %s39, 1
      %s41 = scalar_select %p38, %s39, %s40
      %p44 = pneg %p38
      %p45 = scmp.eq.s32.totalorder %s15, 1
      %p46 = por %p44, %p45
      %p47 = scmp.ne.s32.totalorder %s39, %s42
      %p48 = scmp.eq.s32.totalorder %s15, 0
      %p49 = por %p47, %p48
      %p50 = scmp.ne.s32.totalorder %s39, %s42
      %p51 = scmp.eq.s32.totalorder %s20, 1
      %p52 = por %p50, %p51
      %p53 = scmp.ne.s32.totalorder %s42, %s43
      %p54 = scmp.eq.s32.totalorder %s20, 0
      %p55 = por %p53, %p54
      %p56 = scmp.ne.s32.totalorder %s42, %s43
      %p57 = scmp.eq.s32.totalorder %s21, 1
      %p58 = por %p56, %p57
      %p60 = scmp.ne.s32.totalorder %s43, %s59
      %p61 = scmp.eq.s32.totalorder %s21, 0
      %p62 = por %p60, %p61
      %s64 = sadd.s32 %s63, 1
      %p67 = scmp.eq.s32.totalorder %s15, 1
      %p68 = scmp.ne.s32.totalorder %s63, %s65
      %p69 = scmp.eq.s32.totalorder %s15, 0
      %p70 = por %p68, %p69
      %p71 = scmp.ne.s32.totalorder %s63, %s65
      %p72 = scmp.eq.s32.totalorder %s20, 1
      %p73 = por %p71, %p72
      %p74 = scmp.ne.s32.totalorder %s65, %s66
      %p75 = scmp.eq.s32.totalorder %s20, 0
      %p76 = por %p74, %p75
      %p77 = scmp.ne.s32.totalorder %s65, %s66
      %p78 = scmp.eq.s32.totalorder %s21, 1
      %p79 = por %p77, %p78
      %p81 = scmp.ne.s32.totalorder %s66, %s80
      %p82 = scmp.eq.s32.totalorder %s21, 0
      %p83 = por %p81, %p82
      %s85 = sadd.s32 %s84, 1
      %p88 = scmp.eq.s32.totalorder %s15, 1
      %p89 = scmp.ne.s32.totalorder %s84, %s86
      %p90 = scmp.eq.s32.totalorder %s15, 0
      %p91 = por %p89, %p90
      %p92 = scmp.ne.s32.totalorder %s84, %s86
      %p93 = scmp.eq.s32.totalorder %s20, 1
      %p94 = por %p92, %p93
      %p95 = scmp.ne.s32.totalorder %s86, %s87
      %p96 = scmp.eq.s32.totalorder %s20, 0
      %p97 = por %p95, %p96
      %p98 = scmp.ne.s32.totalorder %s86, %s87
      %p99 = scmp.eq.s32.totalorder %s21, 1
      %p100 = por %p98, %p99
      %p102 = scmp.ne.s32.totalorder %s87, %s101
      %p103 = scmp.eq.s32.totalorder %s21, 0
      %p104 = por %p102, %p103
      %s105 = ssub.s32 %s22, %s34
      %s106 = ssub.s32 %s23, %s30
      %s107 = sor.u32 %s105, %s106
      %p108 = scmp.eq.s32.totalorder %s107, 0
      %s110 = sadd.s32 %s109, 1
      %s111 = scalar_select %p108, %s109, %s110
      %p114 = pneg %p108
      %p115 = scmp.eq.s32.totalorder %s15, 1
      %p116 = por %p114, %p115
      %p117 = scmp.ne.s32.totalorder %s109, %s112
      %p118 = scmp.eq.s32.totalorder %s15, 0
      %p119 = por %p117, %p118
      %p120 = scmp.ne.s32.totalorder %s109, %s112
      %p121 = scmp.eq.s32.totalorder %s20, 1
      %p122 = por %p120, %p121
      %p123 = scmp.ne.s32.totalorder %s112, %s113
      %p124 = scmp.eq.s32.totalorder %s20, 0
      %p125 = por %p123, %p124
      %p126 = scmp.ne.s32.totalorder %s112, %s113
      %p127 = scmp.eq.s32.totalorder %s21, 1
      %p128 = por %p126, %p127
      %p130 = scmp.ne.s32.totalorder %s113, %s129
      %p131 = scmp.eq.s32.totalorder %s21, 0
      %p132 = por %p130, %p131
      %p133 = scmp.le.s32.totalorder 1, %s15
      %p134 = scmp.lt.s32.totalorder %s15, 3
      %p135 = pnand %p133, %p134
      %p136 = pneg %p135
      // Predicated region
      $region9: #{tpu_custom_call.1} parent=5 // pred_check
        _
      $region10: #{tpu_custom_call.1} parent=5 // pred_check_branch
        %138 = sbr.rel (%p135) target = $region12
      $region11: #{tpu_custom_call.1} parent=5 // pred_region
        %s139 = ssub.s32 %s15, 1
        // Predicated region
        $region13: #{tpu_custom_call.1} parent=11 // pred_check
          %p140 = pneg %p76
        $region14: #{tpu_custom_call.1} parent=11 // pred_check_branch
          %142 = sbr.rel (%p140) target = $region16
        $region15: #{tpu_custom_call.1} parent=11 // pred_region
          _
        $region16: #{tpu_custom_call.1} parent=11 // pred_fallthru
          _
        // Predicated region
        $region17: #{tpu_custom_call.1} parent=11 // pred_check
          %p143 = pneg %p97
        $region18: #{tpu_custom_call.1} parent=11 // pred_check_branch
          %145 = sbr.rel (%p143) target = $region20
        $region19: #{tpu_custom_call.1} parent=11 // pred_region
          _
        $region20: #{tpu_custom_call.1} parent=11 // pred_fallthru
          _
      $region12: #{tpu_custom_call.1} parent=5 // pred_fallthru
        _
      %p146 = scmp.lt.s32.totalorder %s15, 2
      // Predicated region
      $region21: #{tpu_custom_call.1} parent=5 // pred_check
        %p147 = pneg %p146
      $region22: #{tpu_custom_call.1} parent=5 // pred_check_branch
        %149 = sbr.rel (%p147) target = $region24
      $region23: #{tpu_custom_call.1} parent=5 // pred_region
        // Predicated region
        $region25: #{tpu_custom_call.1} parent=23 // pred_check
          %p150 = pneg %p49
        $region26: #{tpu_custom_call.1} parent=23 // pred_check_branch
          %152 = sbr.rel (%p150) target = $region28
        $region27: #{tpu_custom_call.1} parent=23 // pred_region
          %s153 = sand.u32 %s39, 1
          %s154 = scalar_lea.sflag [#allocation3], %s153
          %s155 = sand.u32 %s39, 1
          %s156 = smul.addr %s155, 64
          %s157 = scalar_lea.vmem [#allocation2], %s156
          %s158 = smul.u32 2, %s23
          %160 = vsyncadd %s154, 0
          %s161 = smul.addr %s22, 8
          %s162 = sadd.s32 %s158, %s161
          %s163 = smul.addr %s162, 8
          %s164 = scalar_lea.hbm %s0, %s163
          %s165 = sshll.u32 %s164, 4
          %s166 = int_to_ptr.hbm [resolvable:$true] %s165
          %s167 = sshll.u32 %s157, 4
          %s168 = int_to_ptr.vmem [resolvable:$true] %s167
          %173 = dma.hbm_to_vmem [thread:$0]  %s166, 1024, %s168, %s154, 256, 256, 16
        $region28: #{tpu_custom_call.1} parent=23 // pred_fallthru
          _
      $region24: #{tpu_custom_call.1} parent=5 // pred_fallthru
        _
      %p174 = scmp.le.s32.totalorder 1, %s15
      %p175 = scmp.lt.s32.totalorder %s15, 3
      %p176 = pnand %p174, %p175
      %p177 = pneg %p176
      // Predicated region
      $region29: #{tpu_custom_call.1} parent=5 // pred_check
        _
      $region30: #{tpu_custom_call.1} parent=5 // pred_check_branch
        %179 = sbr.rel (%p176) target = $region32
      $region31: #{tpu_custom_call.1} parent=5 // pred_region
        %s180 = ssub.s32 %s15, 1
        %s181 = sand.u32 %s42, 1
        %s182 = scalar_lea.sflag [#allocation3], %s181
        %s183 = sand.u32 %s42, 1
        %s184 = smul.addr %s183, 64
        %s185 = scalar_lea.vmem [#allocation2], %s184
        // Predicated region
        $region33: #{tpu_custom_call.1} parent=31 // pred_check
          %p186 = pneg %p55
        $region34: #{tpu_custom_call.1} parent=31 // pred_check_branch
          %188 = sbr.rel (%p186) target = $region36
        $region35: #{tpu_custom_call.1} parent=31 // pred_region
          %190 = dma.done %s182, 1024
        $region36: #{tpu_custom_call.1} parent=31 // pred_fallthru
          _
        %s191 = sand.u32 %s42, 1
        %s192 = scalar_lea.sflag [#allocation3], %s191
        %s193 = sand.u32 %s42, 1
        %s194 = smul.addr %s193, 64
        %s195 = scalar_lea.vmem [#allocation2], %s194
        %p196 = pneg %p55
        %p197 = pneg %p52
        %p198 = pneg %p76
        %p199 = pneg %p73
        %p200 = pneg %p97
        %p201 = pneg %p94
        %p202 = pneg %p125
        %p203 = pneg %p122
        %s204 = sand.u32 %s112, 1
        %s205 = scalar_lea.sflag [#allocation4], %s204
        %s206 = sand.u32 %s112, 1
        %s207 = smul.addr %s206, 64
        %s208 = scalar_lea.vmem [#allocation5], %s207
        %s209 = smul.u32 2, %s25
        %s210 = smul.u32 2, %s25
        %v211 = vld [vmem:[%s185] sm:$0xff]
        %v212 = vld [vmem:[%s185 + $0x8] sm:$0xff]
        %v213 = vld [vmem:[%s185 + $0x10] sm:$0xff]
        %v214 = vld [vmem:[%s185 + $0x18] sm:$0xff]
        %v215 = vld [vmem:[%s185 + $0x20] sm:$0xff]
        %v216 = vld [vmem:[%s185 + $0x28] sm:$0xff]
        %v217 = vld [vmem:[%s185 + $0x30] sm:$0xff]
        %v218 = vld [vmem:[%s185 + $0x38] sm:$0xff]
        %v219 = vld [vmem:[%s1] sm:$0xff]
        %v220 = vld [vmem:[%s1 + $0x8] sm:$0xff]
        %v221 = vld [vmem:[%s1 + $0x10] sm:$0xff]
        %v222 = vld [vmem:[%s1 + $0x18] sm:$0xff]
        %v223 = vld [vmem:[%s2] sm:$0xff]
        %v224 = vld [vmem:[%s2 + $0x8] sm:$0xff]
        %v225 = vld [vmem:[%s2 + $0x10] sm:$0xff]
        %v226 = vld [vmem:[%s2 + $0x18] sm:$0xff]
        %228 = vset.pattern.permute.xlu0 0
        %229 = vperm.xlu0 %228, %v223
        %v230 = vpop.permute.xlu0 %229
        %233 = vset.pattern.permute.xlu0 0
        %234 = vperm.xlu0 %233, %v224
        %v235 = vpop.permute.xlu0 %234
        %238 = vset.pattern.permute.xlu0 0
        %239 = vperm.xlu0 %238, %v225
        %v240 = vpop.permute.xlu0 %239
        %243 = vset.pattern.permute.xlu0 0
        %244 = vperm.xlu0 %243, %v226
        %v245 = vpop.permute.xlu0 %244
        %vm247 = vcmask 261120
        %v249 = vsel %vm247, %v219, 0
        %v252 = vsel %vm247, %v220, 0
        %v255 = vsel %vm247, %v221, 0
        %v258 = vsel %vm247, %v222, 0
        %260 = vmatpush.msra.mxu0 0.0
        %261 = vmatpush.msra.mxu0 0.0
        %262 = vmatpush.msra.mxu0 0.0
        %263 = vmatpush.msra.mxu0 0.0
        %264 = vmatpush.msra.mxu0 0.0
        %265 = vmatpush.msra.mxu0 0.0
        %266 = vmatpush.msra.mxu0 0.0
        %267 = vmatpush.msra.mxu0 0.0
        %268 = vmatpush.msra.mxu0 0.0
        %269 = vmatpush.msra.mxu0 0.0
        %270 = vmatpush.msra.mxu0 0.0
        %271 = vmatpush.msra.mxu0 0.0
        %272 = vmatpush.msra.mxu0 %v217
        %273 = vmatpush.msra.mxu0 %v215
        %274 = vmatpush.msra.mxu0 %v213
        %275 = vmatpush.msra.mxu0 %v211
        %276 = vmatmul.f32.gmra.mxu0 %v249
        %v277 = vpop.f32.mrf.mxu0
        %v278 = vadd.f32 %v230, %v277
        %279 = vmatmul.f32.gmra.mxu0 %v252
        %v280 = vpop.f32.mrf.mxu0
        %v281 = vadd.f32 %v235, %v280
        %282 = vmatmul.f32.gmra.mxu0 %v255
        %v283 = vpop.f32.mrf.mxu0
        %v284 = vadd.f32 %v240, %v283
        %285 = vmatmul.f32.gmra.mxu0 %v258
        %v286 = vpop.f32.mrf.mxu0
        %v287 = vadd.f32 %v245, %v286
        %288 = vdwg.mxu0
        %289 = vmatpush.msra.mxu0 0.0
        %290 = vmatpush.msra.mxu0 0.0
        %291 = vmatpush.msra.mxu0 0.0
        %292 = vmatpush.msra.mxu0 0.0
        %293 = vmatpush.msra.mxu0 0.0
        %294 = vmatpush.msra.mxu0 0.0
        %295 = vmatpush.msra.mxu0 0.0
        %296 = vmatpush.msra.mxu0 0.0
        %297 = vmatpush.msra.mxu0 0.0
        %298 = vmatpush.msra.mxu0 0.0
        %299 = vmatpush.msra.mxu0 0.0
        %300 = vmatpush.msra.mxu0 0.0
        %301 = vmatpush.msra.mxu0 %v218
        %302 = vmatpush.msra.mxu0 %v216
        %303 = vmatpush.msra.mxu0 %v214
        %304 = vmatpush.msra.mxu0 %v212
        %305 = vmatmul.f32.gmra.mxu0 %v249
        %v306 = vpop.f32.mrf.mxu0
        %v307 = vadd.f32 %v230, %v306
        %308 = vmatmul.f32.gmra.mxu0 %v252
        %v309 = vpop.f32.mrf.mxu0
        %v310 = vadd.f32 %v235, %v309
        %311 = vmatmul.f32.gmra.mxu0 %v255
        %v312 = vpop.f32.mrf.mxu0
        %v313 = vadd.f32 %v240, %v312
        %314 = vmatmul.f32.gmra.mxu0 %v258
        %v315 = vpop.f32.mrf.mxu0
        %v316 = vadd.f32 %v245, %v315
        %317 = vdwg.mxu0
        %v318 = vmax.f32 %v278, 0.0
        %v319 = vmax.f32 %v307, 0.0
        %v320 = vmax.f32 %v281, 0.0
        %v321 = vmax.f32 %v310, 0.0
        %v322 = vmax.f32 %v284, 0.0
        %v323 = vmax.f32 %v313, 0.0
        %v324 = vmax.f32 %v287, 0.0
        %v325 = vmax.f32 %v316, 0.0
        %s326 = scalar_lea.vmem %s1, 32
        %v327 = vld [vmem:[%s326] sm:$0xff]
        %v328 = vld [vmem:[%s326 + $0x8] sm:$0xff]
        %v329 = vld [vmem:[%s326 + $0x10] sm:$0xff]
        %v330 = vld [vmem:[%s326 + $0x18] sm:$0xff]
        %s331 = scalar_lea.vmem %s2, 32
        %v332 = vld [vmem:[%s331] sm:$0xff]
        %v333 = vld [vmem:[%s331 + $0x8] sm:$0xff]
        %v334 = vld [vmem:[%s331 + $0x10] sm:$0xff]
        %v335 = vld [vmem:[%s331 + $0x18] sm:$0xff]
        %337 = vset.pattern.permute.xlu0 0
        %338 = vperm.xlu0 %337, %v332
        %v339 = vpop.permute.xlu0 %338
        %342 = vset.pattern.permute.xlu0 0
        %343 = vperm.xlu0 %342, %v333
        %v344 = vpop.permute.xlu0 %343
        %347 = vset.pattern.permute.xlu0 0
        %348 = vperm.xlu0 %347, %v334
        %v349 = vpop.permute.xlu0 %348
        %352 = vset.pattern.permute.xlu0 0
        %353 = vperm.xlu0 %352, %v335
        %v354 = vpop.permute.xlu0 %353
        %v357 = vsel %vm247, %v327, 0
        %v360 = vsel %vm247, %v328, 0
        %v363 = vsel %vm247, %v329, 0
        %v366 = vsel %vm247, %v330, 0
        %368 = vmatpush.msra.mxu0 0.0
        %369 = vmatpush.msra.mxu0 0.0
        %370 = vmatpush.msra.mxu0 0.0
        %371 = vmatpush.msra.mxu0 0.0
        %372 = vmatpush.msra.mxu0 0.0
        %373 = vmatpush.msra.mxu0 0.0
        %374 = vmatpush.msra.mxu0 0.0
        %375 = vmatpush.msra.mxu0 0.0
        %376 = vmatpush.msra.mxu0 0.0
        %377 = vmatpush.msra.mxu0 0.0
        %378 = vmatpush.msra.mxu0 0.0
        %379 = vmatpush.msra.mxu0 0.0
        %380 = vmatpush.msra.mxu0 %v324
        %381 = vmatpush.msra.mxu0 %v322
        %382 = vmatpush.msra.mxu0 %v320
        %383 = vmatpush.msra.mxu0 %v318
        %384 = vmatmul.f32.gmra.mxu0 %v357
        %v385 = vpop.f32.mrf.mxu0
        %v386 = vadd.f32 %v339, %v385
        %387 = vmatmul.f32.gmra.mxu0 %v360
        %v388 = vpop.f32.mrf.mxu0
        %v389 = vadd.f32 %v344, %v388
        %390 = vmatmul.f32.gmra.mxu0 %v363
        %v391 = vpop.f32.mrf.mxu0
        %v392 = vadd.f32 %v349, %v391
        %393 = vmatmul.f32.gmra.mxu0 %v366
        %v394 = vpop.f32.mrf.mxu0
        %v395 = vadd.f32 %v354, %v394
        %396 = vdwg.mxu0
        %397 = vmatpush.msra.mxu0 0.0
        %398 = vmatpush.msra.mxu0 0.0
        %399 = vmatpush.msra.mxu0 0.0
        %400 = vmatpush.msra.mxu0 0.0
        %401 = vmatpush.msra.mxu0 0.0
        %402 = vmatpush.msra.mxu0 0.0
        %403 = vmatpush.msra.mxu0 0.0
        %404 = vmatpush.msra.mxu0 0.0
        %405 = vmatpush.msra.mxu0 0.0
        %406 = vmatpush.msra.mxu0 0.0
        %407 = vmatpush.msra.mxu0 0.0
        %408 = vmatpush.msra.mxu0 0.0
        %409 = vmatpush.msra.mxu0 %v325
        %410 = vmatpush.msra.mxu0 %v323
        %411 = vmatpush.msra.mxu0 %v321
        %412 = vmatpush.msra.mxu0 %v319
        %413 = vmatmul.f32.gmra.mxu0 %v357
        %v414 = vpop.f32.mrf.mxu0
        %v415 = vadd.f32 %v339, %v414
        %416 = vmatmul.f32.gmra.mxu0 %v360
        %v417 = vpop.f32.mrf.mxu0
        %v418 = vadd.f32 %v344, %v417
        %419 = vmatmul.f32.gmra.mxu0 %v363
        %v420 = vpop.f32.mrf.mxu0
        %v421 = vadd.f32 %v349, %v420
        %422 = vmatmul.f32.gmra.mxu0 %v366
        %v423 = vpop.f32.mrf.mxu0
        %v424 = vadd.f32 %v354, %v423
        %425 = vdwg.mxu0
        %v426 = vmax.f32 %v386, 0.0
        %v427 = vmax.f32 %v415, 0.0
        %v428 = vmax.f32 %v389, 0.0
        %v429 = vmax.f32 %v418, 0.0
        %v430 = vmax.f32 %v392, 0.0
        %v431 = vmax.f32 %v421, 0.0
        %v432 = vmax.f32 %v395, 0.0
        %v433 = vmax.f32 %v424, 0.0
        %v434 = vadd.f32 %v211, %v426
        %v435 = vadd.f32 %v212, %v427
        %v436 = vadd.f32 %v213, %v428
        %v437 = vadd.f32 %v214, %v429
        %v438 = vadd.f32 %v215, %v430
        %v439 = vadd.f32 %v216, %v431
        %v440 = vadd.f32 %v217, %v432
        %v441 = vadd.f32 %v218, %v433
        %s442 = scalar_lea.vmem %s1, 64
        %v443 = vld [vmem:[%s442] sm:$0xff]
        %v444 = vld [vmem:[%s442 + $0x8] sm:$0xff]
        %v445 = vld [vmem:[%s442 + $0x10] sm:$0xff]
        %v446 = vld [vmem:[%s442 + $0x18] sm:$0xff]
        %s447 = scalar_lea.vmem %s2, 64
        %v448 = vld [vmem:[%s447] sm:$0xff]
        %v449 = vld [vmem:[%s447 + $0x8] sm:$0xff]
        %v450 = vld [vmem:[%s447 + $0x10] sm:$0xff]
        %v451 = vld [vmem:[%s447 + $0x18] sm:$0xff]
        %453 = vset.pattern.permute.xlu0 0
        %454 = vperm.xlu0 %453, %v448
        %v455 = vpop.permute.xlu0 %454
        %458 = vset.pattern.permute.xlu0 0
        %459 = vperm.xlu0 %458, %v449
        %v460 = vpop.permute.xlu0 %459
        %463 = vset.pattern.permute.xlu0 0
        %464 = vperm.xlu0 %463, %v450
        %v465 = vpop.permute.xlu0 %464
        %468 = vset.pattern.permute.xlu0 0
        %469 = vperm.xlu0 %468, %v451
        %v470 = vpop.permute.xlu0 %469
        %v473 = vsel %vm247, %v443, 0
        %v476 = vsel %vm247, %v444, 0
        %v479 = vsel %vm247, %v445, 0
        %v482 = vsel %vm247, %v446, 0
        %484 = vmatpush.msra.mxu0 0.0
        %485 = vmatpush.msra.mxu0 0.0
        %486 = vmatpush.msra.mxu0 0.0
        %487 = vmatpush.msra.mxu0 0.0
        %488 = vmatpush.msra.mxu0 0.0
        %489 = vmatpush.msra.mxu0 0.0
        %490 = vmatpush.msra.mxu0 0.0
        %491 = vmatpush.msra.mxu0 0.0
        %492 = vmatpush.msra.mxu0 0.0
        %493 = vmatpush.msra.mxu0 0.0
        %494 = vmatpush.msra.mxu0 0.0
        %495 = vmatpush.msra.mxu0 0.0
        %496 = vmatpush.msra.mxu0 %v440
        %497 = vmatpush.msra.mxu0 %v438
        %498 = vmatpush.msra.mxu0 %v436
        %499 = vmatpush.msra.mxu0 %v434
        %500 = vmatmul.f32.gmra.mxu0 %v473
        %v501 = vpop.f32.mrf.mxu0
        %v502 = vadd.f32 %v455, %v501
        %503 = vmatmul.f32.gmra.mxu0 %v476
        %v504 = vpop.f32.mrf.mxu0
        %v505 = vadd.f32 %v460, %v504
        %506 = vmatmul.f32.gmra.mxu0 %v479
        %v507 = vpop.f32.mrf.mxu0
        %v508 = vadd.f32 %v465, %v507
        %509 = vmatmul.f32.gmra.mxu0 %v482
        %v510 = vpop.f32.mrf.mxu0
        %v511 = vadd.f32 %v470, %v510
        %512 = vdwg.mxu0
        %513 = vmatpush.msra.mxu0 0.0
        %514 = vmatpush.msra.mxu0 0.0
        %515 = vmatpush.msra.mxu0 0.0
        %516 = vmatpush.msra.mxu0 0.0
        %517 = vmatpush.msra.mxu0 0.0
        %518 = vmatpush.msra.mxu0 0.0
        %519 = vmatpush.msra.mxu0 0.0
        %520 = vmatpush.msra.mxu0 0.0
        %521 = vmatpush.msra.mxu0 0.0
        %522 = vmatpush.msra.mxu0 0.0
        %523 = vmatpush.msra.mxu0 0.0
        %524 = vmatpush.msra.mxu0 0.0
        %525 = vmatpush.msra.mxu0 %v441
        %526 = vmatpush.msra.mxu0 %v439
        %527 = vmatpush.msra.mxu0 %v437
        %528 = vmatpush.msra.mxu0 %v435
        %529 = vmatmul.f32.gmra.mxu0 %v473
        %v530 = vpop.f32.mrf.mxu0
        %v531 = vadd.f32 %v455, %v530
        %532 = vmatmul.f32.gmra.mxu0 %v476
        %v533 = vpop.f32.mrf.mxu0
        %v534 = vadd.f32 %v460, %v533
        %535 = vmatmul.f32.gmra.mxu0 %v479
        %v536 = vpop.f32.mrf.mxu0
        %v537 = vadd.f32 %v465, %v536
        %538 = vmatmul.f32.gmra.mxu0 %v482
        %v539 = vpop.f32.mrf.mxu0
        %v540 = vadd.f32 %v470, %v539
        %541 = vdwg.mxu0
        %v542 = vmax.f32 %v502, 0.0
        %v543 = vmax.f32 %v531, 0.0
        %v544 = vmax.f32 %v505, 0.0
        %v545 = vmax.f32 %v534, 0.0
        %v546 = vmax.f32 %v508, 0.0
        %v547 = vmax.f32 %v537, 0.0
        %v548 = vmax.f32 %v511, 0.0
        %v549 = vmax.f32 %v540, 0.0
        %v550 = vadd.f32 %v318, %v542
        %v551 = vadd.f32 %v319, %v543
        %v552 = vadd.f32 %v320, %v544
        %v553 = vadd.f32 %v321, %v545
        %v554 = vadd.f32 %v322, %v546
        %v555 = vadd.f32 %v323, %v547
        %v556 = vadd.f32 %v324, %v548
        %v557 = vadd.f32 %v325, %v549
        %558 = vst [vmem:[%s208] sm:$0xff] %v550
        %559 = vst [vmem:[%s208 + $0x8] sm:$0xff] %v551
        %560 = vst [vmem:[%s208 + $0x10] sm:$0xff] %v552
        %561 = vst [vmem:[%s208 + $0x18] sm:$0xff] %v553
        %562 = vst [vmem:[%s208 + $0x20] sm:$0xff] %v554
        %563 = vst [vmem:[%s208 + $0x28] sm:$0xff] %v555
        %564 = vst [vmem:[%s208 + $0x30] sm:$0xff] %v556
        %565 = vst [vmem:[%s208 + $0x38] sm:$0xff] %v557
        %s566 = sand.u32 %s112, 1
        %s567 = scalar_lea.sflag [#allocation4], %s566
        %s568 = sand.u32 %s112, 1
        %s569 = smul.addr %s568, 64
        %s570 = scalar_lea.vmem [#allocation5], %s569
        // Predicated region
        $region37: #{tpu_custom_call.1} parent=31 // pred_check
          %p571 = pneg %p122
        $region38: #{tpu_custom_call.1} parent=31 // pred_check_branch
          %573 = sbr.rel (%p571) target = $region40
        $region39: #{tpu_custom_call.1} parent=31 // pred_region
          %s574 = smul.u32 2, %s25
          %576 = vsyncadd %s567, 0
          %s577 = smul.addr %s24, 8
          %s578 = sadd.s32 %s574, %s577
          %s579 = smul.addr %s578, 8
          %s580 = scalar_lea.hbm %s3, %s579
          %s581 = sshll.u32 %s570, 4
          %s582 = int_to_ptr.vmem [resolvable:$true] %s581
          %s583 = sshll.u32 %s580, 4
          %s584 = int_to_ptr.hbm [resolvable:$true] %s583
          %589 = dma.vmem_to_hbm [thread:$0]  %s582, 1024, %s584, %s567, 256, 256, 16
        $region40: #{tpu_custom_call.1} parent=31 // pred_fallthru
          _
      $region32: #{tpu_custom_call.1} parent=5 // pred_fallthru
        _
      %p590 = scmp.le.s32.totalorder 2, %s15
      // Predicated region
      $region41: #{tpu_custom_call.1} parent=5 // pred_check
        %p591 = pneg %p590
      $region42: #{tpu_custom_call.1} parent=5 // pred_check_branch
        %593 = sbr.rel (%p591) target = $region44
      $region43: #{tpu_custom_call.1} parent=5 // pred_region
        %s594 = ssub.s32 %s15, 2
        // Predicated region
        $region45: #{tpu_custom_call.1} parent=43 // pred_check
          %p595 = pneg %p128
        $region46: #{tpu_custom_call.1} parent=43 // pred_check_branch
          %597 = sbr.rel (%p595) target = $region48
        $region47: #{tpu_custom_call.1} parent=43 // pred_region
          %s598 = sand.u32 %s113, 1
          %s599 = scalar_lea.sflag [#allocation4], %s598
          %s600 = sand.u32 %s113, 1
          %s601 = smul.addr %s600, 64
          %s602 = scalar_lea.vmem [#allocation5], %s601
          %604 = dma.done %s599, 1024
        $region48: #{tpu_custom_call.1} parent=43 // pred_fallthru
          _
      $region44: #{tpu_custom_call.1} parent=5 // pred_fallthru
        _
    $region6: #{tpu_custom_call.1} parent=1 // loop_footer
      %s19 = sadd.s32 1, %s15
    $region7: #{tpu_custom_call.1} parent=1 // loop_footer_branch
      %14 = sbr.rel target = $region3
    $region8: #{tpu_custom_call.1} parent=1 // loop_exit
      _
    %605 = vsyncpa [#allocation3], 1
    %s606 = scalar_lea.sflag [#allocation3], 1
    %607 = vsyncpa %s606, 1
    %608 = vsyncpa [#allocation4], 1
    %s609 = scalar_lea.sflag [#allocation4], 1
    %610 = vsyncpa %s609, 1

</llo_original>
